<compile_context>
chip_gen: v5e
topology: v5e:2x2
jax: 0.10.0
libtpu: 0.0.40
codegen_flags: <defaults>
</compile_context>

<pallas_src>
import jax
import jax.numpy as jnp
from jax.experimental import pallas as pl
from jax.experimental.pallas import tpu as pltpu


def _square_sub_kernel(x_ref, o_ref):
    # Aligned path: x_ref (tb, tn), o_ref (tb, tn). The (i, j, c) grid places
    # this dense tile in the c-th copy region of the (B, 2N) output.
    v = x_ref[...]
    o_ref[...] = v * v - v


def _square_sub_dup_kernel(x_ref, o_ref):
    # Fallback path (N not 128-aligned): x_ref (tb, N), o_ref (tb, 2N).
    v = x_ref[...]
    y = v * v - v
    n = x_ref.shape[1]
    o_ref[:, :n] = y
    o_ref[:, n:] = y


def _pick_row_tile(B, cap=256):
    """Largest multiple of 8 that divides B, capped; full B when B <= cap."""
    if B <= cap:
        return B
    t = cap - cap % 8
    while t >= 8:
        if B % t == 0:
            return t
        t -= 8
    return B  # no aligned divisor; full-extent block is always legal


def _pick_col_tile(N, cap=2048):
    """Largest multiple of 128 that divides N, capped at `cap`, or None."""
    t = min(cap - cap % 128, N - N % 128)
    while t >= 128:
        if N % t == 0:
            return t
        t -= 128
    return None


def _model_forward_impl(x):
    B = x.shape[0]
    N = 1
    for d in x.shape[1:]:
        N *= d
    xf = x.reshape(B, N)  # free reshape (contiguous)

    tb = _pick_row_tile(B)
    nb = B // tb
    out_shape = jax.ShapeDtypeStruct((B, 2 * N), x.dtype)

    tn = _pick_col_tile(N) if N % 128 == 0 else None

    if tn is not None:
        # Main path: 3-axis grid, innermost copy axis, dense (tb, tn) blocks.
        nj = N // tn
        out = pl.pallas_call(
            _square_sub_kernel,
            out_shape=out_shape,
            grid=(nb, nj, 2),
            in_specs=[pl.BlockSpec((tb, tn), lambda i, j, c: (i, j))],
            out_specs=pl.BlockSpec((tb, tn), lambda i, j, c: (i, c * nj + j)),
            compiler_params=pltpu.CompilerParams(
                dimension_semantics=("parallel", "parallel", "parallel")),
        )(xf)
    else:
        # Fallback for N not a multiple of 128: full-width blocks
        # (block dims equal the full array dims => always layout-legal).
        # TODO(synk): very large non-128-aligned N would need a ragged-cdiv
        # path over a (B, 2, N) layout to bound VMEM; not needed at these sizes.
        out = pl.pallas_call(
            _square_sub_dup_kernel,
            out_shape=out_shape,
            grid=(nb,),
            in_specs=[pl.BlockSpec((tb, N), lambda i: (i, 0))],
            out_specs=pl.BlockSpec((tb, 2 * N), lambda i: (i, 0)),
            compiler_params=pltpu.CompilerParams(
                dimension_semantics=("parallel",)),
        )(xf)

    return out  # already (B, 2N) == cat(dim=1) -> elementwise -> view(B, -1)


model_forward = jax.jit(_model_forward_impl)


if __name__ == "__main__":
    key = jax.random.PRNGKey(0)
    x = jax.random.normal(key, (2, 2, 2), dtype=jnp.float32)

    result = model_forward(x)
    jax.block_until_ready(result)

    # Pure-JAX reference of the PyTorch forward.
    ref = jnp.concatenate([x, x], axis=1)
    ref = ref * ref - ref
    ref = ref.reshape(ref.shape[0], -1)

    assert result.shape == (2, 8)
    assert jnp.allclose(result, ref, atol=1e-6), "mismatch vs reference"

    print("KERNEL_OK")
</pallas_src>

<mosaic_0001>
module attributes {stable_mosaic.version = 11 : i64} {
  func.func @_square_sub_dup_kernel(%arg0: i32, %arg1: memref<2x4xf32, #tpu.memory_space<vmem>>, %arg2: memref<2x8xf32, #tpu.memory_space<vmem>>) attributes {dimension_semantics = [#tpu.dimension_semantics<parallel>], iteration_bounds = array<i64: 1>, scalar_prefetch = 0 : i64, scratch_operands = 0 : i64, tpu.core_type = #tpu.core_type<tc>, window_params = [{transform_indices = @transform_0, window_bounds = array<i64: 2, 4>}, {transform_indices = @transform_1, window_bounds = array<i64: 2, 8>}]} {
    %c0 = arith.constant 0 : index
    %c0_0 = arith.constant 0 : index
    %0 = vector.load %arg1[%c0, %c0_0] : memref<2x4xf32, #tpu.memory_space<vmem>>, vector<2x4xf32>
    %1 = arith.mulf %0, %0 : vector<2x4xf32>
    %2 = arith.subf %1, %0 : vector<2x4xf32>
    %c0_1 = arith.constant 0 : index
    %c0_2 = arith.constant 0 : index
    %3 = vector.load %arg2[%c0_1, %c0_2] : memref<2x8xf32, #tpu.memory_space<vmem>>, vector<2x4xf32>
    tpu.vector_store %arg2[%c0_1, %c0_2], %2 {strides = array<i32>} : memref<2x8xf32, #tpu.memory_space<vmem>>, vector<2x4xf32>,
    %c0_3 = arith.constant 0 : index
    %c4 = arith.constant 4 : index
    %4 = vector.load %arg2[%c0_3, %c4] : memref<2x8xf32, #tpu.memory_space<vmem>>, vector<2x4xf32>
    tpu.vector_store %arg2[%c0_3, %c4], %2 {strides = array<i32>} : memref<2x8xf32, #tpu.memory_space<vmem>>, vector<2x4xf32>,
    return
  }
  func.func @transform_0(%arg0: i32) -> (i32, i32) {
    %c0_i32 = arith.constant 0 : i32
    %c0_i32_0 = arith.constant 0 : i32
    return %arg0, %c0_i32 : i32, i32
  }
  func.func @transform_1(%arg0: i32) -> (i32, i32) {
    %c0_i32 = arith.constant 0 : i32
    %c0_i32_0 = arith.constant 0 : i32
    return %arg0, %c0_i32 : i32, i32
  }
}

</mosaic_0001>

<llo_original>
// kernel: _model_forward_impl.1
$region0: #{_model_forward_impl.1}
  #allocation0 [shape = 'u32[]', space=smem, size = 0x4, offset = 0x4, fixed_abs, tag = 'smem constant byte address 0x4 - core index']
  #allocation1 [shape = 'u32[72,128]{1,0:T(1,128)}', space=vmem, size = 0x9000, scoped, tag = 'internal scratch']
  %s0 = inlined_call_operand.vmem [shape: f32[2,4], index: 0, kind: input, shape index: {}]
  %s1 = inlined_call_operand.hbm [shape: f32[2,8], index: 1, kind: output, shape index: {}]
  %s2 = sld [smem:[#allocation0]]
  $region14: #{_model_forward_impl.1} parent=0
    _
  %s4 = ssub.s32 1, %s2
  %s5 = scalar_select 0, %s4, %s2
  $region1: #{_model_forward_impl.1} parent=0
    #allocation2 [shape = 'u8[1024]{0}', space=vmem, size = 0x400, scoped, tag = 'output window, operand 0, single buffered']
    #allocation3 [shape = 's32[1]{0}', space=sflag, size = 0x4, scoped, tag = 'scoped memory for _model_forward_impl.1']
    %6 = vsyncpa [#allocation3], 0
    // Predicated region
    $region2: #{_model_forward_impl.1} parent=1 // pred_check
      _
    $region3: #{_model_forward_impl.1} parent=1 // pred_check_branch
      %8 = sbr.rel (0) target = $region5
    $region4: #{_model_forward_impl.1} parent=1 // pred_region
      _
    $region5: #{_model_forward_impl.1} parent=1 // pred_fallthru
      _
    %v9 = vld [vmem:[%s0] sm:$0x3]
    %v10 = vmul.f32 %v9, %v9
    %v11 = vsub.f32 %v10, %v9
    %vm12 = vcmask 25600
    %13 = vst.msk [vmem:[#allocation2] sm:$0x3] %vm12, %v11
    %15 = vrot.lane.b32.xlu0 %v11, 4
    %v16 = vpop.permute.xlu0 %15
    %vm18 = vcmask 58400
    %19 = vst.msk [vmem:[#allocation2] sm:$0x3] %vm18, %v16
    // Predicated region
    $region6: #{_model_forward_impl.1} parent=1 // pred_check
      _
    $region7: #{_model_forward_impl.1} parent=1 // pred_check_branch
      %21 = sbr.rel (0) target = $region9
    $region8: #{_model_forward_impl.1} parent=1 // pred_region
      %23 = vsyncadd [#allocation3], 0
      %s25 = sshll.u32 [#allocation2], 4
      %s26 = int_to_ptr.vmem [resolvable:$true] %s25
      %s27 = sshll.u32 %s1, 4
      %s28 = int_to_ptr.hbm [resolvable:$true] %s27
      %30 = dma.vmem_to_hbm [thread:$0]  %s26, 32, %s28, [#allocation3]
    $region9: #{_model_forward_impl.1} parent=1 // pred_fallthru
      _
    // Predicated region
    $region10: #{_model_forward_impl.1} parent=1 // pred_check
      _
    $region11: #{_model_forward_impl.1} parent=1 // pred_check_branch
      %32 = sbr.rel (0) target = $region13
    $region12: #{_model_forward_impl.1} parent=1 // pred_region
      %34 = dma.done [#allocation3], 32
    $region13: #{_model_forward_impl.1} parent=1 // pred_fallthru
      _
    %35 = vsyncpa [#allocation3], 1

</llo_original>
